<compile_context>
chip_gen: v6e
topology: v6e:2x2x1
jax: 0.10.0
libtpu: 0.0.40
codegen_flags: <defaults>
</compile_context>

<pallas_src>
import functools

import jax
import jax.numpy as jnp
from jax.experimental import pallas as pl
from jax.experimental.pallas import tpu as pltpu


def unet_up_kernel(x_ref, w_ref, bias_ref, gamma_ref, beta_ref, a_ref, o_ref, *,
                   Cin, Cout, K, pad, Lout, G, Cg, same_channels, ws_eps, gn_eps):
    f32 = jnp.float32
    x = x_ref[...].astype(f32)                 # (Cin, Lout)  upsampled activations, length on lanes

    # --- weight standardization: per out-channel over (Cin, K) ---------------------
    w = w_ref[...].astype(f32)                 # (Cout, K*Cin), column index = k*Cin + ci
    wmean = jnp.mean(w, axis=1, keepdims=True)
    wd = w - wmean
    wvar = jnp.mean(wd * wd, axis=1, keepdims=True)            # biased variance
    wn = wd * jax.lax.rsqrt(wvar + ws_eps)                     # (Cout, K*Cin)

    # --- conv1d (stride 1, 'same' padding) as ONE im2col dot ------------------------
    # xs_k[:, l] = x_up[:, l + k - pad] (zero outside); shifts are lane rolls (XLU)
    # plus an iota mask for the halo, so no padded copy of x is ever materialized.
    # (Assumes Lout is lane-friendly, i.e. a multiple of 128 — typical for UNet maps.)
    lane = jax.lax.broadcasted_iota(jnp.int32, (Cin, Lout), 1)
    cols = []
    for k in range(K):
        s = k - pad
        if s == 0:
            cols.append(x)
        else:
            xs = pltpu.roll(x, shift=(-s) % Lout, axis=1)
            if s > 0:
                xs = jnp.where(lane < Lout - s, xs, 0.0)
            else:
                xs = jnp.where(lane >= -s, xs, 0.0)
            cols.append(xs)
    x_col = cols[0] if K == 1 else jnp.concatenate(cols, axis=0)        # (K*Cin, Lout)
    acc = jnp.dot(wn, x_col, preferred_element_type=f32) + bias_ref[...]  # (Cout, Lout)

    # --- GroupNorm: stats per (batch, group) over (Cg, Lout) -------------------------
    s_ch = jnp.sum(acc, axis=1, keepdims=True)                 # (Cout, 1) lane reduce
    ss_ch = jnp.sum(acc * acc, axis=1, keepdims=True)          # (Cout, 1)
    n = float(Cg * Lout)
    mean_parts, rstd_parts = [], []
    for g in range(G):                                          # G is small & static
        sg = jnp.sum(s_ch[g * Cg:(g + 1) * Cg, :], keepdims=True)   # (1, 1)
        ssg = jnp.sum(ss_ch[g * Cg:(g + 1) * Cg, :], keepdims=True)
        m = sg / n
        v = ssg / n - m * m                                     # biased variance
        r = jax.lax.rsqrt(v + gn_eps)
        mean_parts.append(jnp.zeros((Cg, 1), f32) + m)
        rstd_parts.append(jnp.zeros((Cg, 1), f32) + r)
    mean_c = mean_parts[0] if G == 1 else jnp.concatenate(mean_parts, axis=0)   # (Cout, 1)
    rstd_c = rstd_parts[0] if G == 1 else jnp.concatenate(rstd_parts, axis=0)

    scale = rstd_c * gamma_ref[...]                             # (Cout, 1)
    shift = beta_ref[...] - mean_c * scale
    y = acc * scale + shift

    # --- PReLU (single shared slope) + residual --------------------------------------
    alpha = a_ref[0]
    y = jnp.where(y >= 0.0, y, alpha * y)
    if same_channels:
        y = (x + y) * 0.5
    o_ref[...] = y.astype(o_ref.dtype)


def unet_up_forward(x, w, bias, gamma, beta, a, *, gn=8, factor=2):
    """x: (B, Cin, L) NCL like PyTorch; returns (B, Cout, factor*L) NCL."""
    B, Cin, L = x.shape
    Cout, _, K = w.shape
    pad = (K - 1) // 2                         # get_padding(K, dilation=1)
    Lout = L * factor
    same_channels = (Cin == Cout)
    G = gn
    assert Cout % G == 0
    Cg = Cout // G
    ws_eps = 1e-5 if x.dtype == jnp.float32 else 1e-3

    # Nearest-neighbour upsample along the minor (length) axis; stays in NCL so the
    # kernel's lane axis carries Lout and no transposes are needed anywhere.
    # TODO(synk): fuse the upsample itself into the kernel (polyphase taps + strided
    # lane store) to remove this remaining wrapper HBM pass.
    x_up = jnp.repeat(x, factor, axis=2).astype(jnp.float32)           # (B, Cin, Lout)

    # (Cout, Cin, K) -> (Cout, K*Cin), column index = k*Cin + ci (matches kernel im2col).
    w_kc = jnp.transpose(w, (0, 2, 1)).reshape(Cout, K * Cin).astype(jnp.float32)

    kernel = functools.partial(
        unet_up_kernel,
        Cin=Cin, Cout=Cout, K=K, pad=pad, Lout=Lout, G=G, Cg=Cg,
        same_channels=same_channels, ws_eps=ws_eps, gn_eps=1e-5)

    out = pl.pallas_call(
        kernel,
        out_shape=jax.ShapeDtypeStruct((B, Cout, Lout), jnp.float32),
        grid=(B,),
        in_specs=[
            pl.BlockSpec((None, Cin, Lout), lambda b: (b, 0, 0)),      # x_up (per batch)
            pl.BlockSpec((Cout, K * Cin), lambda b: (0, 0)),           # conv weight
            pl.BlockSpec((Cout, 1), lambda b: (0, 0)),                 # bias
            pl.BlockSpec((Cout, 1), lambda b: (0, 0)),                 # GN gamma
            pl.BlockSpec((Cout, 1), lambda b: (0, 0)),                 # GN beta
            pl.BlockSpec(memory_space=pltpu.MemorySpace.SMEM),         # PReLU slope
        ],
        out_specs=pl.BlockSpec((None, Cout, Lout), lambda b: (b, 0, 0)),
        compiler_params=pltpu.CompilerParams(
            dimension_semantics=("parallel",)),
    )(
        x_up,
        w_kc,
        bias.reshape(Cout, 1).astype(jnp.float32),
        gamma.reshape(Cout, 1).astype(jnp.float32),
        beta.reshape(Cout, 1).astype(jnp.float32),
        a.reshape(1).astype(jnp.float32),
    )
    return out


def unet_up_reference(x, w, bias, gamma, beta, a, *, gn=8, factor=2):
    """Pure-JAX reference (mirrors the PyTorch forward)."""
    B, Cin, L = x.shape
    Cout, _, K = w.shape
    pad = (K - 1) // 2
    Lout = L * factor

    x_up = jnp.repeat(x, factor, axis=2)
    mean = jnp.mean(w, axis=(1, 2), keepdims=True)
    var = jnp.mean((w - mean) ** 2, axis=(1, 2), keepdims=True)
    wn = (w - mean) * jax.lax.rsqrt(var + 1e-5)
    y = jax.lax.conv_general_dilated(
        x_up, wn, window_strides=(1,), padding=[(pad, pad)],
        dimension_numbers=('NCH', 'OIH', 'NCH')) + bias[None, :, None]

    G = gn
    yg = y.reshape(B, G, (Cout // G) * Lout)
    m = yg.mean(axis=2, keepdims=True)
    v = ((yg - m) ** 2).mean(axis=2, keepdims=True)
    yn = ((yg - m) * jax.lax.rsqrt(v + 1e-5)).reshape(B, Cout, Lout)
    yn = yn * gamma[None, :, None] + beta[None, :, None]
    yp = jnp.where(yn >= 0, yn, a * yn)
    if Cin == Cout:
        yp = (x_up + yp) / 2
    return yp


if __name__ == "__main__":
    key = jax.random.PRNGKey(0)
    a = jnp.array(0.25, dtype=jnp.float32)            # PReLU default init

    # Config 1: UnetUp(in=8, out=8, kernel_size=3, gn=8, factor=2) — residual active.
    B, Cin, Cout, L, K, GN = 2, 8, 8, 64, 3, 8
    k1, k2, k3, k4, k5, key = jax.random.split(key, 6)
    x = jax.random.normal(k1, (B, Cin, L), dtype=jnp.float32)
    w = jax.random.normal(k2, (Cout, Cin, K), dtype=jnp.float32) * 0.3
    bias = jax.random.normal(k3, (Cout,), dtype=jnp.float32) * 0.1
    gamma = 1.0 + 0.1 * jax.random.normal(k4, (Cout,), dtype=jnp.float32)
    beta = 0.1 * jax.random.normal(k5, (Cout,), dtype=jnp.float32)

    out = jax.block_until_ready(unet_up_forward(x, w, bias, gamma, beta, a, gn=GN, factor=2))
    ref = jax.block_until_ready(unet_up_reference(x, w, bias, gamma, beta, a, gn=GN, factor=2))
    assert out.shape == (B, Cout, 2 * L), out.shape
    assert jnp.allclose(out, ref, rtol=1e-3, atol=1e-3), float(jnp.max(jnp.abs(out - ref)))

    # Config 2: UnetUp(in=8, out=16, kernel_size=3, gn=4, factor=2) — no residual, Cg > 1.
    B2, Cin2, Cout2, L2, K2, GN2 = 2, 8, 16, 64, 3, 4
    j1, j2, j3, j4, j5, key = jax.random.split(key, 6)
    x2 = jax.random.normal(j1, (B2, Cin2, L2), dtype=jnp.float32)
    w2 = jax.random.normal(j2, (Cout2, Cin2, K2), dtype=jnp.float32) * 0.3
    bias2 = jax.random.normal(j3, (Cout2,), dtype=jnp.float32) * 0.1
    gamma2 = 1.0 + 0.1 * jax.random.normal(j4, (Cout2,), dtype=jnp.float32)
    beta2 = 0.1 * jax.random.normal(j5, (Cout2,), dtype=jnp.float32)

    out2 = jax.block_until_ready(unet_up_forward(x2, w2, bias2, gamma2, beta2, a, gn=GN2, factor=2))
    ref2 = jax.block_until_ready(unet_up_reference(x2, w2, bias2, gamma2, beta2, a, gn=GN2, factor=2))
    assert out2.shape == (B2, Cout2, 2 * L2), out2.shape
    assert jnp.allclose(out2, ref2, rtol=1e-3, atol=1e-3), float(jnp.max(jnp.abs(out2 - ref2)))

    print("KERNEL_OK")
</pallas_src>

<mosaic_0001>
module attributes {stable_mosaic.version = 11 : i64} {
  func.func @unet_up_kernel(%arg0: i32, %arg1: memref<1x8x128xf32, #tpu.memory_space<vmem>>, %arg2: memref<8x24xf32, #tpu.memory_space<vmem>>, %arg3: memref<8x1xf32, #tpu.memory_space<vmem>>, %arg4: memref<8x1xf32, #tpu.memory_space<vmem>>, %arg5: memref<8x1xf32, #tpu.memory_space<vmem>>, %arg6: memref<1xf32, #tpu.memory_space<smem>>, %arg7: memref<1x8x128xf32, #tpu.memory_space<vmem>>) attributes {dimension_semantics = [#tpu.dimension_semantics<parallel>], iteration_bounds = array<i64: 2>, scalar_prefetch = 0 : i64, scratch_operands = 0 : i64, tpu.core_type = #tpu.core_type<tc>, window_params = [{transform_indices = @transform_0, window_bounds = array<i64: 1, 8, 128>}, {pipeline_mode = #tpu.pipeline_mode<synchronous>, transform_indices = @transform_1, window_bounds = array<i64: 8, 24>}, {pipeline_mode = #tpu.pipeline_mode<synchronous>, transform_indices = @transform_2, window_bounds = array<i64: 8, 1>}, {pipeline_mode = #tpu.pipeline_mode<synchronous>, transform_indices = @transform_3, window_bounds = array<i64: 8, 1>}, {pipeline_mode = #tpu.pipeline_mode<synchronous>, transform_indices = @transform_4, window_bounds = array<i64: 8, 1>}, {transform_indices = @transform_5, window_bounds = array<i64: 1>}, {transform_indices = @transform_6, window_bounds = array<i64: 1, 8, 128>}]} {
    %c0 = arith.constant 0 : index
    %c0_0 = arith.constant 0 : index
    %c0_1 = arith.constant 0 : index
    %0 = vector.load %arg1[%c0, %c0_0, %c0_1] : memref<1x8x128xf32, #tpu.memory_space<vmem>>, vector<1x8x128xf32>
    %1 = vector.shape_cast %0 : vector<1x8x128xf32> to vector<8x128xf32>
    %c0_2 = arith.constant 0 : index
    %c0_3 = arith.constant 0 : index
    %2 = vector.load %arg2[%c0_2, %c0_3] : memref<8x24xf32, #tpu.memory_space<vmem>>, vector<8x24xf32>
    %cst = arith.constant dense<0.000000e+00> : vector<8xf32>
    %3 = vector.multi_reduction <add>, %2, %cst [1] : vector<8x24xf32> to vector<8xf32>
    %4 = vector.shape_cast %3 : vector<8xf32> to vector<8x1xf32>
    %cst_4 = arith.constant 2.400000e+01 : f32
    %5 = vector.broadcast %cst_4 : f32 to vector<8x1xf32>
    %6 = arith.divf %4, %5 : vector<8x1xf32>
    %7 = vector.broadcast %6 : vector<8x1xf32> to vector<8x24xf32>
    %8 = arith.subf %2, %7 : vector<8x24xf32>
    %9 = arith.mulf %8, %8 : vector<8x24xf32>
    %cst_5 = arith.constant dense<0.000000e+00> : vector<8xf32>
    %10 = vector.multi_reduction <add>, %9, %cst_5 [1] : vector<8x24xf32> to vector<8xf32>
    %11 = vector.shape_cast %10 : vector<8xf32> to vector<8x1xf32>
    %cst_6 = arith.constant 2.400000e+01 : f32
    %12 = vector.broadcast %cst_6 : f32 to vector<8x1xf32>
    %13 = arith.divf %11, %12 : vector<8x1xf32>
    %cst_7 = arith.constant 9.99999974E-6 : f32
    %14 = vector.broadcast %cst_7 : f32 to vector<8x1xf32>
    %15 = arith.addf %13, %14 : vector<8x1xf32>
    %16 = math.rsqrt %15 : vector<8x1xf32>
    %17 = vector.broadcast %16 : vector<8x1xf32> to vector<8x24xf32>
    %18 = arith.mulf %8, %17 : vector<8x24xf32>
    %19 = tpu.iota {dimensions = array<i32: 1>} : vector<8x128xi32>
    %c1_i32 = arith.constant 1 : i32
    %20 = tpu.dynamic_rotate %1 by %c1_i32 dim 1 : vector<8x128xf32>, i32 -> vector<8x128xf32>
    %c1_i32_8 = arith.constant 1 : i32
    %21 = vector.broadcast %c1_i32_8 : i32 to vector<8x128xi32>
    %22 = arith.cmpi sge, %19, %21 : vector<8x128xi32>
    %cst_9 = arith.constant 0.000000e+00 : f32
    %23 = vector.broadcast %cst_9 : f32 to vector<8x128xf32>
    %24 = arith.select %22, %20, %23 : vector<8x128xi1>, vector<8x128xf32>
    %c127_i32 = arith.constant 127 : i32
    %25 = tpu.dynamic_rotate %1 by %c127_i32 dim 1 : vector<8x128xf32>, i32 -> vector<8x128xf32>
    %c127_i32_10 = arith.constant 127 : i32
    %26 = vector.broadcast %c127_i32_10 : i32 to vector<8x128xi32>
    %27 = arith.cmpi slt, %19, %26 : vector<8x128xi32>
    %cst_11 = arith.constant 0.000000e+00 : f32
    %28 = vector.broadcast %cst_11 : f32 to vector<8x128xf32>
    %29 = arith.select %27, %25, %28 : vector<8x128xi1>, vector<8x128xf32>
    %30 = tpu.concatenate %24, %1, %29 in 0 : vector<8x128xf32>, vector<8x128xf32>, vector<8x128xf32> -> vector<24x128xf32>
    %cst_12 = arith.constant dense<0.000000e+00> : vector<8x128xf32>
    %31 = tpu.matmul %18, %30, %cst_12 {dimension_numbers = #tpu.dot_dimension_numbers<[1], [0], [0], [1], [0, 0, 1, 1], [], []>} : vector<8x24xf32>, vector<24x128xf32>, vector<8x128xf32> -> vector<8x128xf32>
    %c0_13 = arith.constant 0 : index
    %c0_14 = arith.constant 0 : index
    %32 = vector.load %arg3[%c0_13, %c0_14] : memref<8x1xf32, #tpu.memory_space<vmem>>, vector<8x1xf32>
    %33 = vector.broadcast %32 : vector<8x1xf32> to vector<8x128xf32>
    %34 = arith.addf %31, %33 : vector<8x128xf32>
    %cst_15 = arith.constant dense<0.000000e+00> : vector<8xf32>
    %35 = vector.multi_reduction <add>, %34, %cst_15 [1] : vector<8x128xf32> to vector<8xf32>
    %36 = vector.shape_cast %35 : vector<8xf32> to vector<8x1xf32>
    %37 = arith.mulf %34, %34 : vector<8x128xf32>
    %cst_16 = arith.constant dense<0.000000e+00> : vector<8xf32>
    %38 = vector.multi_reduction <add>, %37, %cst_16 [1] : vector<8x128xf32> to vector<8xf32>
    %39 = vector.shape_cast %38 : vector<8xf32> to vector<8x1xf32>
    %40 = vector.extract_strided_slice %36 {offsets = [0, 0], sizes = [1, 1], strides = [1, 1]} : vector<8x1xf32> to vector<1x1xf32>
    %41 = vector.shape_cast %40 : vector<1x1xf32> to vector<1x1x1xf32>
    %cst_17 = arith.constant dense<0.000000e+00> : vector<1xf32>
    %42 = vector.multi_reduction <add>, %41, %cst_17 [1, 2] : vector<1x1x1xf32> to vector<1xf32>
    %43 = vector.shape_cast %42 : vector<1xf32> to vector<1x1x1xf32>
    %44 = vector.extract %43[0, 0, 0] : f32 from vector<1x1x1xf32>
    %45 = vector.broadcast %44 : f32 to vector<1x1xf32>
    %46 = vector.extract_strided_slice %39 {offsets = [0, 0], sizes = [1, 1], strides = [1, 1]} : vector<8x1xf32> to vector<1x1xf32>
    %47 = vector.shape_cast %46 : vector<1x1xf32> to vector<1x1x1xf32>
    %cst_18 = arith.constant dense<0.000000e+00> : vector<1xf32>
    %48 = vector.multi_reduction <add>, %47, %cst_18 [1, 2] : vector<1x1x1xf32> to vector<1xf32>
    %49 = vector.shape_cast %48 : vector<1xf32> to vector<1x1x1xf32>
    %50 = vector.extract %49[0, 0, 0] : f32 from vector<1x1x1xf32>
    %51 = vector.broadcast %50 : f32 to vector<1x1xf32>
    %cst_19 = arith.constant 1.280000e+02 : f32
    %52 = vector.broadcast %cst_19 : f32 to vector<1x1xf32>
    %53 = arith.divf %45, %52 : vector<1x1xf32>
    %cst_20 = arith.constant 1.280000e+02 : f32
    %54 = vector.broadcast %cst_20 : f32 to vector<1x1xf32>
    %55 = arith.divf %51, %54 : vector<1x1xf32>
    %56 = arith.mulf %53, %53 : vector<1x1xf32>
    %57 = arith.subf %55, %56 : vector<1x1xf32>
    %cst_21 = arith.constant 9.99999974E-6 : f32
    %58 = vector.broadcast %cst_21 : f32 to vector<1x1xf32>
    %59 = arith.addf %57, %58 : vector<1x1xf32>
    %60 = math.rsqrt %59 : vector<1x1xf32>
    %cst_22 = arith.constant 0.000000e+00 : f32
    %61 = vector.broadcast %cst_22 : f32 to vector<1x1xf32>
    %62 = arith.addf %61, %53 : vector<1x1xf32>
    %cst_23 = arith.constant 0.000000e+00 : f32
    %63 = vector.broadcast %cst_23 : f32 to vector<1x1xf32>
    %64 = arith.addf %63, %60 : vector<1x1xf32>
    %65 = vector.extract_strided_slice %36 {offsets = [1, 0], sizes = [1, 1], strides = [1, 1]} : vector<8x1xf32> to vector<1x1xf32>
    %66 = vector.shape_cast %65 : vector<1x1xf32> to vector<1x1x1xf32>
    %cst_24 = arith.constant dense<0.000000e+00> : vector<1xf32>
    %67 = vector.multi_reduction <add>, %66, %cst_24 [1, 2] : vector<1x1x1xf32> to vector<1xf32>
    %68 = vector.shape_cast %67 : vector<1xf32> to vector<1x1x1xf32>
    %69 = vector.extract %68[0, 0, 0] : f32 from vector<1x1x1xf32>
    %70 = vector.broadcast %69 : f32 to vector<1x1xf32>
    %71 = vector.extract_strided_slice %39 {offsets = [1, 0], sizes = [1, 1], strides = [1, 1]} : vector<8x1xf32> to vector<1x1xf32>
    %72 = vector.shape_cast %71 : vector<1x1xf32> to vector<1x1x1xf32>
    %cst_25 = arith.constant dense<0.000000e+00> : vector<1xf32>
    %73 = vector.multi_reduction <add>, %72, %cst_25 [1, 2] : vector<1x1x1xf32> to vector<1xf32>
    %74 = vector.shape_cast %73 : vector<1xf32> to vector<1x1x1xf32>
    %75 = vector.extract %74[0, 0, 0] : f32 from vector<1x1x1xf32>
    %76 = vector.broadcast %75 : f32 to vector<1x1xf32>
    %cst_26 = arith.constant 1.280000e+02 : f32
    %77 = vector.broadcast %cst_26 : f32 to vector<1x1xf32>
    %78 = arith.divf %70, %77 : vector<1x1xf32>
    %cst_27 = arith.constant 1.280000e+02 : f32
    %79 = vector.broadcast %cst_27 : f32 to vector<1x1xf32>
    %80 = arith.divf %76, %79 : vector<1x1xf32>
    %81 = arith.mulf %78, %78 : vector<1x1xf32>
    %82 = arith.subf %80, %81 : vector<1x1xf32>
    %cst_28 = arith.constant 9.99999974E-6 : f32
    %83 = vector.broadcast %cst_28 : f32 to vector<1x1xf32>
    %84 = arith.addf %82, %83 : vector<1x1xf32>
    %85 = math.rsqrt %84 : vector<1x1xf32>
    %cst_29 = arith.constant 0.000000e+00 : f32
    %86 = vector.broadcast %cst_29 : f32 to vector<1x1xf32>
    %87 = arith.addf %86, %78 : vector<1x1xf32>
    %cst_30 = arith.constant 0.000000e+00 : f32
    %88 = vector.broadcast %cst_30 : f32 to vector<1x1xf32>
    %89 = arith.addf %88, %85 : vector<1x1xf32>
    %90 = vector.extract_strided_slice %36 {offsets = [2, 0], sizes = [1, 1], strides = [1, 1]} : vector<8x1xf32> to vector<1x1xf32>
    %91 = vector.shape_cast %90 : vector<1x1xf32> to vector<1x1x1xf32>
    %cst_31 = arith.constant dense<0.000000e+00> : vector<1xf32>
    %92 = vector.multi_reduction <add>, %91, %cst_31 [1, 2] : vector<1x1x1xf32> to vector<1xf32>
    %93 = vector.shape_cast %92 : vector<1xf32> to vector<1x1x1xf32>
    %94 = vector.extract %93[0, 0, 0] : f32 from vector<1x1x1xf32>
    %95 = vector.broadcast %94 : f32 to vector<1x1xf32>
    %96 = vector.extract_strided_slice %39 {offsets = [2, 0], sizes = [1, 1], strides = [1, 1]} : vector<8x1xf32> to vector<1x1xf32>
    %97 = vector.shape_cast %96 : vector<1x1xf32> to vector<1x1x1xf32>
    %cst_32 = arith.constant dense<0.000000e+00> : vector<1xf32>
    %98 = vector.multi_reduction <add>, %97, %cst_32 [1, 2] : vector<1x1x1xf32> to vector<1xf32>
    %99 = vector.shape_cast %98 : vector<1xf32> to vector<1x1x1xf32>
    %100 = vector.extract %99[0, 0, 0] : f32 from vector<1x1x1xf32>
    %101 = vector.broadcast %100 : f32 to vector<1x1xf32>
    %cst_33 = arith.constant 1.280000e+02 : f32
    %102 = vector.broadcast %cst_33 : f32 to vector<1x1xf32>
    %103 = arith.divf %95, %102 : vector<1x1xf32>
    %cst_34 = arith.constant 1.280000e+02 : f32
    %104 = vector.broadcast %cst_34 : f32 to vector<1x1xf32>
    %105 = arith.divf %101, %104 : vector<1x1xf32>
    %106 = arith.mulf %103, %103 : vector<1x1xf32>
    %107 = arith.subf %105, %106 : vector<1x1xf32>
    %cst_35 = arith.constant 9.99999974E-6 : f32
    %108 = vector.broadcast %cst_35 : f32 to vector<1x1xf32>
    %109 = arith.addf %107, %108 : vector<1x1xf32>
    %110 = math.rsqrt %109 : vector<1x1xf32>
    %cst_36 = arith.constant 0.000000e+00 : f32
    %111 = vector.broadcast %cst_36 : f32 to vector<1x1xf32>
    %112 = arith.addf %111, %103 : vector<1x1xf32>
    %cst_37 = arith.constant 0.000000e+00 : f32
    %113 = vector.broadcast %cst_37 : f32 to vector<1x1xf32>
    %114 = arith.addf %113, %110 : vector<1x1xf32>
    %115 = vector.extract_strided_slice %36 {offsets = [3, 0], sizes = [1, 1], strides = [1, 1]} : vector<8x1xf32> to vector<1x1xf32>
    %116 = vector.shape_cast %115 : vector<1x1xf32> to vector<1x1x1xf32>
    %cst_38 = arith.constant dense<0.000000e+00> : vector<1xf32>
    %117 = vector.multi_reduction <add>, %116, %cst_38 [1, 2] : vector<1x1x1xf32> to vector<1xf32>
    %118 = vector.shape_cast %117 : vector<1xf32> to vector<1x1x1xf32>
    %119 = vector.extract %118[0, 0, 0] : f32 from vector<1x1x1xf32>
    %120 = vector.broadcast %119 : f32 to vector<1x1xf32>
    %121 = vector.extract_strided_slice %39 {offsets = [3, 0], sizes = [1, 1], strides = [1, 1]} : vector<8x1xf32> to vector<1x1xf32>
    %122 = vector.shape_cast %121 : vector<1x1xf32> to vector<1x1x1xf32>
    %cst_39 = arith.constant dense<0.000000e+00> : vector<1xf32>
    %123 = vector.multi_reduction <add>, %122, %cst_39 [1, 2] : vector<1x1x1xf32> to vector<1xf32>
    %124 = vector.shape_cast %123 : vector<1xf32> to vector<1x1x1xf32>
    %125 = vector.extract %124[0, 0, 0] : f32 from vector<1x1x1xf32>
    %126 = vector.broadcast %125 : f32 to vector<1x1xf32>
    %cst_40 = arith.constant 1.280000e+02 : f32
    %127 = vector.broadcast %cst_40 : f32 to vector<1x1xf32>
    %128 = arith.divf %120, %127 : vector<1x1xf32>
    %cst_41 = arith.constant 1.280000e+02 : f32
    %129 = vector.broadcast %cst_41 : f32 to vector<1x1xf32>
    %130 = arith.divf %126, %129 : vector<1x1xf32>
    %131 = arith.mulf %128, %128 : vector<1x1xf32>
    %132 = arith.subf %130, %131 : vector<1x1xf32>
    %cst_42 = arith.constant 9.99999974E-6 : f32
    %133 = vector.broadcast %cst_42 : f32 to vector<1x1xf32>
    %134 = arith.addf %132, %133 : vector<1x1xf32>
    %135 = math.rsqrt %134 : vector<1x1xf32>
    %cst_43 = arith.constant 0.000000e+00 : f32
    %136 = vector.broadcast %cst_43 : f32 to vector<1x1xf32>
    %137 = arith.addf %136, %128 : vector<1x1xf32>
    %cst_44 = arith.constant 0.000000e+00 : f32
    %138 = vector.broadcast %cst_44 : f32 to vector<1x1xf32>
    %139 = arith.addf %138, %135 : vector<1x1xf32>
    %140 = vector.extract_strided_slice %36 {offsets = [4, 0], sizes = [1, 1], strides = [1, 1]} : vector<8x1xf32> to vector<1x1xf32>
    %141 = vector.shape_cast %140 : vector<1x1xf32> to vector<1x1x1xf32>
    %cst_45 = arith.constant dense<0.000000e+00> : vector<1xf32>
    %142 = vector.multi_reduction <add>, %141, %cst_45 [1, 2] : vector<1x1x1xf32> to vector<1xf32>
    %143 = vector.shape_cast %142 : vector<1xf32> to vector<1x1x1xf32>
    %144 = vector.extract %143[0, 0, 0] : f32 from vector<1x1x1xf32>
    %145 = vector.broadcast %144 : f32 to vector<1x1xf32>
    %146 = vector.extract_strided_slice %39 {offsets = [4, 0], sizes = [1, 1], strides = [1, 1]} : vector<8x1xf32> to vector<1x1xf32>
    %147 = vector.shape_cast %146 : vector<1x1xf32> to vector<1x1x1xf32>
    %cst_46 = arith.constant dense<0.000000e+00> : vector<1xf32>
    %148 = vector.multi_reduction <add>, %147, %cst_46 [1, 2] : vector<1x1x1xf32> to vector<1xf32>
    %149 = vector.shape_cast %148 : vector<1xf32> to vector<1x1x1xf32>
    %150 = vector.extract %149[0, 0, 0] : f32 from vector<1x1x1xf32>
    %151 = vector.broadcast %150 : f32 to vector<1x1xf32>
    %cst_47 = arith.constant 1.280000e+02 : f32
    %152 = vector.broadcast %cst_47 : f32 to vector<1x1xf32>
    %153 = arith.divf %145, %152 : vector<1x1xf32>
    %cst_48 = arith.constant 1.280000e+02 : f32
    %154 = vector.broadcast %cst_48 : f32 to vector<1x1xf32>
    %155 = arith.divf %151, %154 : vector<1x1xf32>
    %156 = arith.mulf %153, %153 : vector<1x1xf32>
    %157 = arith.subf %155, %156 : vector<1x1xf32>
    %cst_49 = arith.constant 9.99999974E-6 : f32
    %158 = vector.broadcast %cst_49 : f32 to vector<1x1xf32>
    %159 = arith.addf %157, %158 : vector<1x1xf32>
    %160 = math.rsqrt %159 : vector<1x1xf32>
    %cst_50 = arith.constant 0.000000e+00 : f32
    %161 = vector.broadcast %cst_50 : f32 to vector<1x1xf32>
    %162 = arith.addf %161, %153 : vector<1x1xf32>
    %cst_51 = arith.constant 0.000000e+00 : f32
    %163 = vector.broadcast %cst_51 : f32 to vector<1x1xf32>
    %164 = arith.addf %163, %160 : vector<1x1xf32>
    %165 = vector.extract_strided_slice %36 {offsets = [5, 0], sizes = [1, 1], strides = [1, 1]} : vector<8x1xf32> to vector<1x1xf32>
    %166 = vector.shape_cast %165 : vector<1x1xf32> to vector<1x1x1xf32>
    %cst_52 = arith.constant dense<0.000000e+00> : vector<1xf32>
    %167 = vector.multi_reduction <add>, %166, %cst_52 [1, 2] : vector<1x1x1xf32> to vector<1xf32>
    %168 = vector.shape_cast %167 : vector<1xf32> to vector<1x1x1xf32>
    %169 = vector.extract %168[0, 0, 0] : f32 from vector<1x1x1xf32>
    %170 = vector.broadcast %169 : f32 to vector<1x1xf32>
    %171 = vector.extract_strided_slice %39 {offsets = [5, 0], sizes = [1, 1], strides = [1, 1]} : vector<8x1xf32> to vector<1x1xf32>
    %172 = vector.shape_cast %171 : vector<1x1xf32> to vector<1x1x1xf32>
    %cst_53 = arith.constant dense<0.000000e+00> : vector<1xf32>
    %173 = vector.multi_reduction <add>, %172, %cst_53 [1, 2] : vector<1x1x1xf32> to vector<1xf32>
    %174 = vector.shape_cast %173 : vector<1xf32> to vector<1x1x1xf32>
    %175 = vector.extract %174[0, 0, 0] : f32 from vector<1x1x1xf32>
    %176 = vector.broadcast %175 : f32 to vector<1x1xf32>
    %cst_54 = arith.constant 1.280000e+02 : f32
    %177 = vector.broadcast %cst_54 : f32 to vector<1x1xf32>
    %178 = arith.divf %170, %177 : vector<1x1xf32>
    %cst_55 = arith.constant 1.280000e+02 : f32
    %179 = vector.broadcast %cst_55 : f32 to vector<1x1xf32>
    %180 = arith.divf %176, %179 : vector<1x1xf32>
    %181 = arith.mulf %178, %178 : vector<1x1xf32>
    %182 = arith.subf %180, %181 : vector<1x1xf32>
    %cst_56 = arith.constant 9.99999974E-6 : f32
    %183 = vector.broadcast %cst_56 : f32 to vector<1x1xf32>
    %184 = arith.addf %182, %183 : vector<1x1xf32>
    %185 = math.rsqrt %184 : vector<1x1xf32>
    %cst_57 = arith.constant 0.000000e+00 : f32
    %186 = vector.broadcast %cst_57 : f32 to vector<1x1xf32>
    %187 = arith.addf %186, %178 : vector<1x1xf32>
    %cst_58 = arith.constant 0.000000e+00 : f32
    %188 = vector.broadcast %cst_58 : f32 to vector<1x1xf32>
    %189 = arith.addf %188, %185 : vector<1x1xf32>
    %190 = vector.extract_strided_slice %36 {offsets = [6, 0], sizes = [1, 1], strides = [1, 1]} : vector<8x1xf32> to vector<1x1xf32>
    %191 = vector.shape_cast %190 : vector<1x1xf32> to vector<1x1x1xf32>
    %cst_59 = arith.constant dense<0.000000e+00> : vector<1xf32>
    %192 = vector.multi_reduction <add>, %191, %cst_59 [1, 2] : vector<1x1x1xf32> to vector<1xf32>
    %193 = vector.shape_cast %192 : vector<1xf32> to vector<1x1x1xf32>
    %194 = vector.extract %193[0, 0, 0] : f32 from vector<1x1x1xf32>
    %195 = vector.broadcast %194 : f32 to vector<1x1xf32>
    %196 = vector.extract_strided_slice %39 {offsets = [6, 0], sizes = [1, 1], strides = [1, 1]} : vector<8x1xf32> to vector<1x1xf32>
    %197 = vector.shape_cast %196 : vector<1x1xf32> to vector<1x1x1xf32>
    %cst_60 = arith.constant dense<0.000000e+00> : vector<1xf32>
    %198 = vector.multi_reduction <add>, %197, %cst_60 [1, 2] : vector<1x1x1xf32> to vector<1xf32>
    %199 = vector.shape_cast %198 : vector<1xf32> to vector<1x1x1xf32>
    %200 = vector.extract %199[0, 0, 0] : f32 from vector<1x1x1xf32>
    %201 = vector.broadcast %200 : f32 to vector<1x1xf32>
    %cst_61 = arith.constant 1.280000e+02 : f32
    %202 = vector.broadcast %cst_61 : f32 to vector<1x1xf32>
    %203 = arith.divf %195, %202 : vector<1x1xf32>
    %cst_62 = arith.constant 1.280000e+02 : f32
    %204 = vector.broadcast %cst_62 : f32 to vector<1x1xf32>
    %205 = arith.divf %201, %204 : vector<1x1xf32>
    %206 = arith.mulf %203, %203 : vector<1x1xf32>
    %207 = arith.subf %205, %206 : vector<1x1xf32>
    %cst_63 = arith.constant 9.99999974E-6 : f32
    %208 = vector.broadcast %cst_63 : f32 to vector<1x1xf32>
    %209 = arith.addf %207, %208 : vector<1x1xf32>
    %210 = math.rsqrt %209 : vector<1x1xf32>
    %cst_64 = arith.constant 0.000000e+00 : f32
    %211 = vector.broadcast %cst_64 : f32 to vector<1x1xf32>
    %212 = arith.addf %211, %203 : vector<1x1xf32>
    %cst_65 = arith.constant 0.000000e+00 : f32
    %213 = vector.broadcast %cst_65 : f32 to vector<1x1xf32>
    %214 = arith.addf %213, %210 : vector<1x1xf32>
    %215 = vector.extract_strided_slice %36 {offsets = [7, 0], sizes = [1, 1], strides = [1, 1]} : vector<8x1xf32> to vector<1x1xf32>
    %216 = vector.shape_cast %215 : vector<1x1xf32> to vector<1x1x1xf32>
    %cst_66 = arith.constant dense<0.000000e+00> : vector<1xf32>
    %217 = vector.multi_reduction <add>, %216, %cst_66 [1, 2] : vector<1x1x1xf32> to vector<1xf32>
    %218 = vector.shape_cast %217 : vector<1xf32> to vector<1x1x1xf32>
    %219 = vector.extract %218[0, 0, 0] : f32 from vector<1x1x1xf32>
    %220 = vector.broadcast %219 : f32 to vector<1x1xf32>
    %221 = vector.extract_strided_slice %39 {offsets = [7, 0], sizes = [1, 1], strides = [1, 1]} : vector<8x1xf32> to vector<1x1xf32>
    %222 = vector.shape_cast %221 : vector<1x1xf32> to vector<1x1x1xf32>
    %cst_67 = arith.constant dense<0.000000e+00> : vector<1xf32>
    %223 = vector.multi_reduction <add>, %222, %cst_67 [1, 2] : vector<1x1x1xf32> to vector<1xf32>
    %224 = vector.shape_cast %223 : vector<1xf32> to vector<1x1x1xf32>
    %225 = vector.extract %224[0, 0, 0] : f32 from vector<1x1x1xf32>
    %226 = vector.broadcast %225 : f32 to vector<1x1xf32>
    %cst_68 = arith.constant 1.280000e+02 : f32
    %227 = vector.broadcast %cst_68 : f32 to vector<1x1xf32>
    %228 = arith.divf %220, %227 : vector<1x1xf32>
    %cst_69 = arith.constant 1.280000e+02 : f32
    %229 = vector.broadcast %cst_69 : f32 to vector<1x1xf32>
    %230 = arith.divf %226, %229 : vector<1x1xf32>
    %231 = arith.mulf %228, %228 : vector<1x1xf32>
    %232 = arith.subf %230, %231 : vector<1x1xf32>
    %cst_70 = arith.constant 9.99999974E-6 : f32
    %233 = vector.broadcast %cst_70 : f32 to vector<1x1xf32>
    %234 = arith.addf %232, %233 : vector<1x1xf32>
    %235 = math.rsqrt %234 : vector<1x1xf32>
    %cst_71 = arith.constant 0.000000e+00 : f32
    %236 = vector.broadcast %cst_71 : f32 to vector<1x1xf32>
    %237 = arith.addf %236, %228 : vector<1x1xf32>
    %cst_72 = arith.constant 0.000000e+00 : f32
    %238 = vector.broadcast %cst_72 : f32 to vector<1x1xf32>
    %239 = arith.addf %238, %235 : vector<1x1xf32>
    %240 = tpu.concatenate %62, %87, %112, %137, %162, %187, %212, %237 in 0 : vector<1x1xf32>, vector<1x1xf32>, vector<1x1xf32>, vector<1x1xf32>, vector<1x1xf32>, vector<1x1xf32>, vector<1x1xf32>, vector<1x1xf32> -> vector<8x1xf32>
    %241 = tpu.concatenate %64, %89, %114, %139, %164, %189, %214, %239 in 0 : vector<1x1xf32>, vector<1x1xf32>, vector<1x1xf32>, vector<1x1xf32>, vector<1x1xf32>, vector<1x1xf32>, vector<1x1xf32>, vector<1x1xf32> -> vector<8x1xf32>
    %c0_73 = arith.constant 0 : index
    %c0_74 = arith.constant 0 : index
    %242 = vector.load %arg4[%c0_73, %c0_74] : memref<8x1xf32, #tpu.memory_space<vmem>>, vector<8x1xf32>
    %243 = arith.mulf %241, %242 : vector<8x1xf32>
    %c0_75 = arith.constant 0 : index
    %c0_76 = arith.constant 0 : index
    %244 = vector.load %arg5[%c0_75, %c0_76] : memref<8x1xf32, #tpu.memory_space<vmem>>, vector<8x1xf32>
    %245 = arith.mulf %240, %243 : vector<8x1xf32>
    %246 = arith.subf %244, %245 : vector<8x1xf32>
    %247 = vector.broadcast %243 : vector<8x1xf32> to vector<8x128xf32>
    %248 = arith.mulf %34, %247 : vector<8x128xf32>
    %249 = vector.broadcast %246 : vector<8x1xf32> to vector<8x128xf32>
    %250 = arith.addf %248, %249 : vector<8x128xf32>
    %c0_77 = arith.constant 0 : index
    %251 = memref.load %arg6[%c0_77] : memref<1xf32, #tpu.memory_space<smem>>
    %cst_78 = arith.constant 0.000000e+00 : f32
    %252 = vector.broadcast %cst_78 : f32 to vector<8x128xf32>
    %253 = arith.cmpf oge, %250, %252 : vector<8x128xf32>
    %254 = vector.broadcast %251 : f32 to vector<8x128xf32>
    %255 = arith.mulf %254, %250 : vector<8x128xf32>
    %256 = arith.select %253, %250, %255 : vector<8x128xi1>, vector<8x128xf32>
    %257 = arith.addf %1, %256 : vector<8x128xf32>
    %cst_79 = arith.constant 5.000000e-01 : f32
    %258 = vector.broadcast %cst_79 : f32 to vector<8x128xf32>
    %259 = arith.mulf %257, %258 : vector<8x128xf32>
    %c0_80 = arith.constant 0 : index
    %c0_81 = arith.constant 0 : index
    %c0_82 = arith.constant 0 : index
    %260 = vector.load %arg7[%c0_80, %c0_81, %c0_82] : memref<1x8x128xf32, #tpu.memory_space<vmem>>, vector<1x8x128xf32>
    %261 = vector.shape_cast %260 : vector<1x8x128xf32> to vector<8x128xf32>
    %262 = vector.shape_cast %259 : vector<8x128xf32> to vector<1x8x128xf32>
    tpu.vector_store %arg7[%c0_80, %c0_81, %c0_82], %262 {strides = array<i32>} : memref<1x8x128xf32, #tpu.memory_space<vmem>>, vector<1x8x128xf32>,
    return
  }
  func.func @transform_0(%arg0: i32) -> (i32, i32, i32) {
    %c0_i32 = arith.constant 0 : i32
    %c0_i32_0 = arith.constant 0 : i32
    %c0_i32_1 = arith.constant 0 : i32
    return %arg0, %c0_i32, %c0_i32_0 : i32, i32, i32
  }
  func.func @transform_1(%arg0: i32) -> (i32, i32) {
    %c0_i32 = arith.constant 0 : i32
    %c0_i32_0 = arith.constant 0 : i32
    %c0_i32_1 = arith.constant 0 : i32
    return %c0_i32, %c0_i32_0 : i32, i32
  }
  func.func @transform_2(%arg0: i32) -> (i32, i32) {
    %c0_i32 = arith.constant 0 : i32
    %c0_i32_0 = arith.constant 0 : i32
    %c0_i32_1 = arith.constant 0 : i32
    return %c0_i32, %c0_i32_0 : i32, i32
  }
  func.func @transform_3(%arg0: i32) -> (i32, i32) {
    %c0_i32 = arith.constant 0 : i32
    %c0_i32_0 = arith.constant 0 : i32
    %c0_i32_1 = arith.constant 0 : i32
    return %c0_i32, %c0_i32_0 : i32, i32
  }
  func.func @transform_4(%arg0: i32) -> (i32, i32) {
    %c0_i32 = arith.constant 0 : i32
    %c0_i32_0 = arith.constant 0 : i32
    %c0_i32_1 = arith.constant 0 : i32
    return %c0_i32, %c0_i32_0 : i32, i32
  }
  func.func @transform_5(%arg0: i32) -> i32 {
    %c0_i32 = arith.constant 0 : i32
    %c0_i32_0 = arith.constant 0 : i32
    return %c0_i32 : i32
  }
  func.func @transform_6(%arg0: i32) -> (i32, i32, i32) {
    %c0_i32 = arith.constant 0 : i32
    %c0_i32_0 = arith.constant 0 : i32
    %c0_i32_1 = arith.constant 0 : i32
    return %arg0, %c0_i32, %c0_i32_0 : i32, i32, i32
  }
}

</mosaic_0001>

<llo_original>
// kernel: tpu_custom_call.1
$region0: #{tpu_custom_call.1}
  #allocation0 [shape = 'u32[]', space=smem, size = 0x4, offset = 0x4, fixed_abs, tag = 'smem constant byte address 0x4 - core index']
  #allocation1 [shape = 'u32[144,128]{1,0:T(1,128)}', space=vmem, size = 0x12000, scoped, tag = 'internal scratch']
  #allocation2 [shape = 'f32[1]{0:T(128)S(6)}', space=smem, size = 0x200, scoped, tag = 'scoped memory for tpu_custom_call.1']
  %s0 = inlined_call_operand.vmem [shape: f32[2,8,128], index: 0, kind: input, shape index: {}]
  %s1 = inlined_call_operand.vmem [shape: f32[8,24], index: 1, kind: input, shape index: {}]
  %s2 = inlined_call_operand.vmem [shape: f32[8,1], index: 2, kind: input, shape index: {}]
  %s3 = inlined_call_operand.vmem [shape: f32[8,1], index: 3, kind: input, shape index: {}]
  %s4 = inlined_call_operand.vmem [shape: f32[8,1], index: 4, kind: input, shape index: {}]
  %s5 = inlined_call_operand.<no memory space> [shape: f32[1], index: 5, kind: input, shape index: {}]
  %s6 = inlined_call_operand.hbm [shape: f32[2,8,128], index: 6, kind: output, shape index: {}]
  %s7 = sld [smem:[#allocation0]]
  $region57: #{tpu_custom_call.1} parent=0
    _
  %s9 = ssub.s32 1, %s7
  %s10 = scalar_select 0, %s9, %s7
  %11 = sst [smem:[#allocation2]] %s5
  $region1: #{tpu_custom_call.1} parent=0
    #allocation3 [shape = 'u8[8192]{0}', space=vmem, size = 0x2000, scoped, tag = 'output window, operand 0']
    #allocation4 [shape = 's32[2]{0}', space=sflag, size = 0x8, scoped, tag = 'scoped memory for tpu_custom_call.1']
    %12 = vsyncpa [#allocation4], 0
    %s13 = scalar_lea.sflag [#allocation4], 1
    %14 = vsyncpa %s13, 0
    loop: start=0, step=1, limit=4
    $region2: #{tpu_custom_call.1} parent=1 // loop_pre_header
      _
    $region3: #{tpu_custom_call.1} parent=1 // loop_header
      %s16 = sphi 0, %s20
      %p17 = scmp.ge.s32.totalorder %s16, 4
      %s26 = sphi 0, %s28
      %s29 = sphi 0, %s26
      %s30 = sphi 0, %s29
      %s46 = sphi 0, %s30
      %s50 = sphi 0, %s50
      %s52 = sphi 0, %s50
      %s53 = sphi 0, %s52
      %s67 = sphi 0, %s53
      %s71 = sphi 0, %s71
      %s73 = sphi 0, %s71
      %s74 = sphi 0, %s73
      %s88 = sphi 0, %s74
      %s92 = sphi 0, %s92
      %s94 = sphi 0, %s92
      %s95 = sphi 0, %s94
      %s109 = sphi 0, %s95
      %s113 = sphi 0, %s113
      %s115 = sphi 0, %s113
      %s116 = sphi 0, %s115
      %s130 = sphi 0, %s116
      %s134 = sphi 0, %s134
      %s136 = sphi 0, %s134
      %s137 = sphi 0, %s136
      %s151 = sphi 0, %s137
      %s157 = sphi 0, %s159
      %s160 = sphi 0, %s157
      %s161 = sphi 0, %s160
      %s177 = sphi 0, %s161
    $region4: #{tpu_custom_call.1} parent=1 // loop_header_branch
      %19 = sbr.rel (%p17) target = $region8
    $region5: #{tpu_custom_call.1} parent=1 // loop_body
      %s21 = ssub.s32 %s16, 1
      %s22 = ssub.s32 %s16, 2
      %s23 = sadd.s32 %s16, 1
      %s24 = ssub.s32 %s16, %s23
      %p25 = scmp.eq.s32.totalorder %s24, 0
      %s27 = sadd.s32 %s26, 1
      %s28 = scalar_select %p25, %s26, %s27
      %p31 = pneg %p25
      %p32 = scmp.eq.s32.totalorder %s16, 1
      %p33 = por %p31, %p32
      %p34 = scmp.ne.s32.totalorder %s26, %s29
      %p35 = scmp.eq.s32.totalorder %s16, 0
      %p36 = por %p34, %p35
      %p37 = scmp.ne.s32.totalorder %s26, %s29
      %p38 = scmp.eq.s32.totalorder %s21, 1
      %p39 = por %p37, %p38
      %p40 = scmp.ne.s32.totalorder %s29, %s30
      %p41 = scmp.eq.s32.totalorder %s21, 0
      %p42 = por %p40, %p41
      %p43 = scmp.ne.s32.totalorder %s29, %s30
      %p44 = scmp.eq.s32.totalorder %s22, 1
      %p45 = por %p43, %p44
      %p47 = scmp.ne.s32.totalorder %s30, %s46
      %p48 = scmp.eq.s32.totalorder %s22, 0
      %p49 = por %p47, %p48
      %s51 = sadd.s32 %s50, 1
      %p54 = scmp.eq.s32.totalorder %s16, 1
      %p55 = scmp.ne.s32.totalorder %s50, %s52
      %p56 = scmp.eq.s32.totalorder %s16, 0
      %p57 = por %p55, %p56
      %p58 = scmp.ne.s32.totalorder %s50, %s52
      %p59 = scmp.eq.s32.totalorder %s21, 1
      %p60 = por %p58, %p59
      %p61 = scmp.ne.s32.totalorder %s52, %s53
      %p62 = scmp.eq.s32.totalorder %s21, 0
      %p63 = por %p61, %p62
      %p64 = scmp.ne.s32.totalorder %s52, %s53
      %p65 = scmp.eq.s32.totalorder %s22, 1
      %p66 = por %p64, %p65
      %p68 = scmp.ne.s32.totalorder %s53, %s67
      %p69 = scmp.eq.s32.totalorder %s22, 0
      %p70 = por %p68, %p69
      %s72 = sadd.s32 %s71, 1
      %p75 = scmp.eq.s32.totalorder %s16, 1
      %p76 = scmp.ne.s32.totalorder %s71, %s73
      %p77 = scmp.eq.s32.totalorder %s16, 0
      %p78 = por %p76, %p77
      %p79 = scmp.ne.s32.totalorder %s71, %s73
      %p80 = scmp.eq.s32.totalorder %s21, 1
      %p81 = por %p79, %p80
      %p82 = scmp.ne.s32.totalorder %s73, %s74
      %p83 = scmp.eq.s32.totalorder %s21, 0
      %p84 = por %p82, %p83
      %p85 = scmp.ne.s32.totalorder %s73, %s74
      %p86 = scmp.eq.s32.totalorder %s22, 1
      %p87 = por %p85, %p86
      %p89 = scmp.ne.s32.totalorder %s74, %s88
      %p90 = scmp.eq.s32.totalorder %s22, 0
      %p91 = por %p89, %p90
      %s93 = sadd.s32 %s92, 1
      %p96 = scmp.eq.s32.totalorder %s16, 1
      %p97 = scmp.ne.s32.totalorder %s92, %s94
      %p98 = scmp.eq.s32.totalorder %s16, 0
      %p99 = por %p97, %p98
      %p100 = scmp.ne.s32.totalorder %s92, %s94
      %p101 = scmp.eq.s32.totalorder %s21, 1
      %p102 = por %p100, %p101
      %p103 = scmp.ne.s32.totalorder %s94, %s95
      %p104 = scmp.eq.s32.totalorder %s21, 0
      %p105 = por %p103, %p104
      %p106 = scmp.ne.s32.totalorder %s94, %s95
      %p107 = scmp.eq.s32.totalorder %s22, 1
      %p108 = por %p106, %p107
      %p110 = scmp.ne.s32.totalorder %s95, %s109
      %p111 = scmp.eq.s32.totalorder %s22, 0
      %p112 = por %p110, %p111
      %s114 = sadd.s32 %s113, 1
      %p117 = scmp.eq.s32.totalorder %s16, 1
      %p118 = scmp.ne.s32.totalorder %s113, %s115
      %p119 = scmp.eq.s32.totalorder %s16, 0
      %p120 = por %p118, %p119
      %p121 = scmp.ne.s32.totalorder %s113, %s115
      %p122 = scmp.eq.s32.totalorder %s21, 1
      %p123 = por %p121, %p122
      %p124 = scmp.ne.s32.totalorder %s115, %s116
      %p125 = scmp.eq.s32.totalorder %s21, 0
      %p126 = por %p124, %p125
      %p127 = scmp.ne.s32.totalorder %s115, %s116
      %p128 = scmp.eq.s32.totalorder %s22, 1
      %p129 = por %p127, %p128
      %p131 = scmp.ne.s32.totalorder %s116, %s130
      %p132 = scmp.eq.s32.totalorder %s22, 0
      %p133 = por %p131, %p132
      %s135 = sadd.s32 %s134, 1
      %p138 = scmp.eq.s32.totalorder %s16, 1
      %p139 = scmp.ne.s32.totalorder %s134, %s136
      %p140 = scmp.eq.s32.totalorder %s16, 0
      %p141 = por %p139, %p140
      %p142 = scmp.ne.s32.totalorder %s134, %s136
      %p143 = scmp.eq.s32.totalorder %s21, 1
      %p144 = por %p142, %p143
      %p145 = scmp.ne.s32.totalorder %s136, %s137
      %p146 = scmp.eq.s32.totalorder %s21, 0
      %p147 = por %p145, %p146
      %p148 = scmp.ne.s32.totalorder %s136, %s137
      %p149 = scmp.eq.s32.totalorder %s22, 1
      %p150 = por %p148, %p149
      %p152 = scmp.ne.s32.totalorder %s137, %s151
      %p153 = scmp.eq.s32.totalorder %s22, 0
      %p154 = por %p152, %p153
      %s155 = ssub.s32 %s16, %s23
      %p156 = scmp.eq.s32.totalorder %s155, 0
      %s158 = sadd.s32 %s157, 1
      %s159 = scalar_select %p156, %s157, %s158
      %p162 = pneg %p156
      %p163 = scmp.eq.s32.totalorder %s16, 1
      %p164 = por %p162, %p163
      %p165 = scmp.ne.s32.totalorder %s157, %s160
      %p166 = scmp.eq.s32.totalorder %s16, 0
      %p167 = por %p165, %p166
      %p168 = scmp.ne.s32.totalorder %s157, %s160
      %p169 = scmp.eq.s32.totalorder %s21, 1
      %p170 = por %p168, %p169
      %p171 = scmp.ne.s32.totalorder %s160, %s161
      %p172 = scmp.eq.s32.totalorder %s21, 0
      %p173 = por %p171, %p172
      %p174 = scmp.ne.s32.totalorder %s160, %s161
      %p175 = scmp.eq.s32.totalorder %s22, 1
      %p176 = por %p174, %p175
      %p178 = scmp.ne.s32.totalorder %s161, %s177
      %p179 = scmp.eq.s32.totalorder %s22, 0
      %p180 = por %p178, %p179
      %p181 = scmp.le.s32.totalorder 1, %s16
      %p182 = scmp.lt.s32.totalorder %s16, 3
      %p183 = pnand %p181, %p182
      %p184 = pneg %p183
      // Predicated region
      $region9: #{tpu_custom_call.1} parent=5 // pred_check
        _
      $region10: #{tpu_custom_call.1} parent=5 // pred_check_branch
        %186 = sbr.rel (%p183) target = $region12
      $region11: #{tpu_custom_call.1} parent=5 // pred_region
        %s187 = ssub.s32 %s16, 1
        // Predicated region
        $region13: #{tpu_custom_call.1} parent=11 // pred_check
          %p188 = pneg %p63
        $region14: #{tpu_custom_call.1} parent=11 // pred_check_branch
          %190 = sbr.rel (%p188) target = $region16
        $region15: #{tpu_custom_call.1} parent=11 // pred_region
          _
        $region16: #{tpu_custom_call.1} parent=11 // pred_fallthru
          _
        // Predicated region
        $region17: #{tpu_custom_call.1} parent=11 // pred_check
          %p191 = pneg %p84
        $region18: #{tpu_custom_call.1} parent=11 // pred_check_branch
          %193 = sbr.rel (%p191) target = $region20
        $region19: #{tpu_custom_call.1} parent=11 // pred_region
          _
        $region20: #{tpu_custom_call.1} parent=11 // pred_fallthru
          _
        // Predicated region
        $region21: #{tpu_custom_call.1} parent=11 // pred_check
          %p194 = pneg %p105
        $region22: #{tpu_custom_call.1} parent=11 // pred_check_branch
          %196 = sbr.rel (%p194) target = $region24
        $region23: #{tpu_custom_call.1} parent=11 // pred_region
          _
        $region24: #{tpu_custom_call.1} parent=11 // pred_fallthru
          _
        // Predicated region
        $region25: #{tpu_custom_call.1} parent=11 // pred_check
          %p197 = pneg %p126
        $region26: #{tpu_custom_call.1} parent=11 // pred_check_branch
          %199 = sbr.rel (%p197) target = $region28
        $region27: #{tpu_custom_call.1} parent=11 // pred_region
          _
        $region28: #{tpu_custom_call.1} parent=11 // pred_fallthru
          _
        // Predicated region
        $region29: #{tpu_custom_call.1} parent=11 // pred_check
          %p200 = pneg %p147
        $region30: #{tpu_custom_call.1} parent=11 // pred_check_branch
          %202 = sbr.rel (%p200) target = $region32
        $region31: #{tpu_custom_call.1} parent=11 // pred_region
          _
        $region32: #{tpu_custom_call.1} parent=11 // pred_fallthru
          _
      $region12: #{tpu_custom_call.1} parent=5 // pred_fallthru
        _
      %p203 = scmp.lt.s32.totalorder %s16, 2
      // Predicated region
      $region33: #{tpu_custom_call.1} parent=5 // pred_check
        %p204 = pneg %p203
      $region34: #{tpu_custom_call.1} parent=5 // pred_check_branch
        %206 = sbr.rel (%p204) target = $region36
      $region35: #{tpu_custom_call.1} parent=5 // pred_region
        // Predicated region
        $region37: #{tpu_custom_call.1} parent=35 // pred_check
          %p207 = pneg %p36
        $region38: #{tpu_custom_call.1} parent=35 // pred_check_branch
          %209 = sbr.rel (%p207) target = $region40
        $region39: #{tpu_custom_call.1} parent=35 // pred_region
          %p210 = scmp.lt.s32.totalorder %s16, 1
          %s211 = scalar_select %p210, %s16, 1
          %s212 = smul.addr %s211, 8
          %s213 = scalar_lea.vmem %s0, %s212
        $region40: #{tpu_custom_call.1} parent=35 // pred_fallthru
          _
      $region36: #{tpu_custom_call.1} parent=5 // pred_fallthru
        _
      %p214 = scmp.le.s32.totalorder 1, %s16
      %p215 = scmp.lt.s32.totalorder %s16, 3
      %p216 = pnand %p214, %p215
      %p217 = pneg %p216
      // Predicated region
      $region41: #{tpu_custom_call.1} parent=5 // pred_check
        _
      $region42: #{tpu_custom_call.1} parent=5 // pred_check_branch
        %219 = sbr.rel (%p216) target = $region44
      $region43: #{tpu_custom_call.1} parent=5 // pred_region
        %s220 = ssub.s32 %s16, 1
        %p221 = scmp.lt.s32.totalorder %s21, 1
        %s222 = scalar_select %p221, %s21, 1
        %s223 = smul.addr %s222, 8
        %s224 = scalar_lea.vmem %s0, %s223
        %p225 = pneg %p42
        %p226 = pneg %p39
        %p227 = pneg %p63
        %p228 = pneg %p60
        %p229 = pneg %p84
        %p230 = pneg %p81
        %p231 = pneg %p105
        %p232 = pneg %p102
        %p233 = pneg %p126
        %p234 = pneg %p123
        %p235 = pneg %p147
        %p236 = pneg %p144
        %p237 = pneg %p173
        %p238 = pneg %p170
        %s239 = sand.u32 %s160, 1
        %s240 = scalar_lea.sflag [#allocation4], %s239
        %s241 = sand.u32 %s160, 1
        %s242 = smul.addr %s241, 8
        %s243 = scalar_lea.vmem [#allocation3], %s242
        %p244 = scmp.lt.s32.totalorder %s21, 1
        %s245 = scalar_select %p244, %s21, 1
        %s246 = smul.addr %s245, 8
        %s247 = scalar_lea.vmem %s0, %s246
        %v248 = vld [vmem:[%s247] sm:$0xff]
        %v249 = vld [vmem:[%s1] sm:$0xff]
        %vm250 = vcmask 195584
        %v251 = vsel %vm250, %v249, 0.0
        %252 = vadd.xlane.f32.xlu0 %v251
        %v253 = vpop.xlane.xlu0 %252
        %v254 = vrcp.pop 24.0
        %v255 = vmul.f32 %v253, %v254
        %v256 = vsub.f32 %v249, %v255
        %v257 = vmul.f32 %v256, %v256
        %v258 = vsel %vm250, %v257, 0.0
        %259 = vadd.xlane.f32.xlu0 %v258
        %v260 = vpop.xlane.xlu0 %259
        %v261 = vmul.f32 %v260, %v254
        %v262 = vadd.f32 %v261, 1e-05
        %v263 = vrsqrt.pop %v262
        %v264 = vmul.f32 %v256, %v263
        %v265 = vlaneseq
        %v266 = vand.u32 %v265, 127
        %267 = vrot.lane.b32.xlu0 %v248, 1
        %v268 = vpop.permute.xlu0 %267
        %vm269 = vcmp.ge.s32.totalorder %v266, 1
        %v270 = vsel %vm269, %v268, 0.0
        %271 = vrot.lane.b32.xlu0 %v248, 127
        %v272 = vpop.permute.xlu0 %271
        %vm273 = vcmp.lt.s32.totalorder %v266, 127
        %v274 = vsel %vm273, %v272, 0.0
        %v275 = vld [vmem:[%s2] sm:$0xff]
        %277 = vset.pattern.permute.xlu0 0
        %278 = vperm.xlu0 %277, %v275
        %v279 = vpop.permute.xlu0 %278
        %v282 = vsel %vm250, %v264, 0
        %284 = vmatprep.subr.mxu0 0.0
        %285 = vmatpush1.msra.mxu0 0.0
        %286 = vmatprep.subr.mxu0 0.0
        %287 = vmatpush1.msra.mxu0 0.0
        %288 = vmatprep.subr.mxu0 0.0
        %289 = vmatpush1.msra.mxu0 0.0
        %290 = vmatprep.subr.mxu0 0.0
        %291 = vmatpush1.msra.mxu0 0.0
        %292 = vmatprep.subr.mxu0 0.0
        %293 = vmatpush1.msra.mxu0 0.0
        %294 = vmatprep.subr.mxu0 0.0
        %295 = vmatpush1.msra.mxu0 0.0
        %296 = vmatprep.subr.mxu0 0.0
        %297 = vmatpush1.msra.mxu0 0.0
        %298 = vmatprep.subr.mxu0 0.0
        %299 = vmatpush1.msra.mxu0 0.0
        %300 = vmatprep.subr.mxu0 0.0
        %301 = vmatpush1.msra.mxu0 0.0
        %302 = vmatprep.subr.mxu0 0.0
        %303 = vmatpush1.msra.mxu0 0.0
        %304 = vmatprep.subr.mxu0 0.0
        %305 = vmatpush1.msra.mxu0 0.0
        %306 = vmatprep.subr.mxu0 0.0
        %307 = vmatpush1.msra.mxu0 0.0
        %308 = vmatprep.subr.mxu0 0.0
        %309 = vmatpush1.msra.mxu0 0.0
        %310 = vmatprep.subr.mxu0 0.0
        %311 = vmatpush1.msra.mxu0 %v274
        %312 = vmatprep.subr.mxu0 0.0
        %313 = vmatpush1.msra.mxu0 %v248
        %314 = vmatprep.subr.mxu0 0.0
        %315 = vmatpush1.msra.mxu0 %v270
        %316 = vmatprep.subr.mxu0 0.0
        %317 = vmatpush2.msra.mxu0 0.0
        %318 = vmatprep.subr.mxu0 0.0
        %319 = vmatpush2.msra.mxu0 0.0
        %320 = vmatprep.subr.mxu0 0.0
        %321 = vmatpush2.msra.mxu0 0.0
        %322 = vmatprep.subr.mxu0 0.0
        %323 = vmatpush2.msra.mxu0 0.0
        %324 = vmatprep.subr.mxu0 0.0
        %325 = vmatpush2.msra.mxu0 0.0
        %326 = vmatprep.subr.mxu0 0.0
        %327 = vmatpush2.msra.mxu0 0.0
        %328 = vmatprep.subr.mxu0 0.0
        %329 = vmatpush2.msra.mxu0 0.0
        %330 = vmatprep.subr.mxu0 0.0
        %331 = vmatpush2.msra.mxu0 0.0
        %332 = vmatprep.subr.mxu0 0.0
        %333 = vmatpush2.msra.mxu0 0.0
        %334 = vmatprep.subr.mxu0 0.0
        %335 = vmatpush2.msra.mxu0 0.0
        %336 = vmatprep.subr.mxu0 0.0
        %337 = vmatpush2.msra.mxu0 0.0
        %338 = vmatprep.subr.mxu0 0.0
        %339 = vmatpush2.msra.mxu0 0.0
        %340 = vmatprep.subr.mxu0 0.0
        %341 = vmatpush2.msra.mxu0 0.0
        %342 = vmatprep.subr.mxu0 0.0
        %343 = vmatpush2.msra.mxu0 0.0
        %344 = vmatprep.subr.mxu0 0.0
        %345 = vmatpush2.msra.mxu0 0.0
        %346 = vmatprep.subr.mxu0 0.0
        %347 = vmatpush2.msra.mxu0 0.0
        %348 = vmatprep.mubr.f32.mxu0 0.0
        %349 = vmatmul.mubr.f32.gmra.mxu0 %v282
        %v350 = vpop.f32.mrf.mxu0
        %v351 = vadd.f32 %v279, %v350
        %v352 = vpop.f32.mrf.mxu0
        %353 = vdwg.mxu0
        %354 = vadd.xlane.f32.xlu0 %v351
        %v355 = vpop.xlane.xlu0 %354
        %v356 = vmul.f32 %v351, %v351
        %357 = vadd.xlane.f32.xlu0 %v356
        %v358 = vpop.xlane.xlu0 %357
        %v359 = vadd.f32 %v355, 0.0
        %s360 = vtos %v359
        %v361 = vstv %s360
        %v362 = vadd.f32 %v358, 0.0
        %s363 = vtos %v362
        %v364 = vstv %s363
        %v365 = vrcp.pop 128.0
        %v366 = vmul.f32 %v361, %v365
        %v367 = vmul.f32 %v364, %v365
        %v368 = vmul.f32 %v366, %v366
        %v369 = vsub.f32 %v367, %v368
        %v370 = vadd.f32 %v369, 1e-05
        %v371 = vrsqrt.pop %v370
        %v372 = vadd.f32 %v366, 0.0
        %v373 = vadd.f32 %v371, 0.0
        %v375 = vrot.slane %v359, 1
        %s377 = vtos %v375
        %v378 = vstv %s377
        %v380 = vrot.slane %v362, 1
        %s382 = vtos %v380
        %v383 = vstv %s382
        %v384 = vmul.f32 %v378, %v365
        %v385 = vmul.f32 %v383, %v365
        %v386 = vmul.f32 %v384, %v384
        %v387 = vsub.f32 %v385, %v386
        %v388 = vadd.f32 %v387, 1e-05
        %v389 = vrsqrt.pop %v388
        %v390 = vadd.f32 %v384, 0.0
        %v391 = vadd.f32 %v389, 0.0
        %v392 = vrot.slane %v359, 2
        %s394 = vtos %v392
        %v395 = vstv %s394
        %v396 = vrot.slane %v362, 2
        %s398 = vtos %v396
        %v399 = vstv %s398
        %v400 = vmul.f32 %v395, %v365
        %v401 = vmul.f32 %v399, %v365
        %v402 = vmul.f32 %v400, %v400
        %v403 = vsub.f32 %v401, %v402
        %v404 = vadd.f32 %v403, 1e-05
        %v405 = vrsqrt.pop %v404
        %v406 = vadd.f32 %v400, 0.0
        %v407 = vadd.f32 %v405, 0.0
        %v408 = vrot.slane %v359, 3
        %s410 = vtos %v408
        %v411 = vstv %s410
        %v412 = vrot.slane %v362, 3
        %s414 = vtos %v412
        %v415 = vstv %s414
        %v416 = vmul.f32 %v411, %v365
        %v417 = vmul.f32 %v415, %v365
        %v418 = vmul.f32 %v416, %v416
        %v419 = vsub.f32 %v417, %v418
        %v420 = vadd.f32 %v419, 1e-05
        %v421 = vrsqrt.pop %v420
        %v422 = vadd.f32 %v416, 0.0
        %v423 = vadd.f32 %v421, 0.0
        %v424 = vrot.slane %v359, 4
        %s426 = vtos %v424
        %v427 = vstv %s426
        %v428 = vrot.slane %v362, 4
        %s430 = vtos %v428
        %v431 = vstv %s430
        %v432 = vmul.f32 %v427, %v365
        %v433 = vmul.f32 %v431, %v365
        %v434 = vmul.f32 %v432, %v432
        %v435 = vsub.f32 %v433, %v434
        %v436 = vadd.f32 %v435, 1e-05
        %v437 = vrsqrt.pop %v436
        %v438 = vadd.f32 %v432, 0.0
        %v439 = vadd.f32 %v437, 0.0
        %v440 = vrot.slane %v359, 5
        %s442 = vtos %v440
        %v443 = vstv %s442
        %v444 = vrot.slane %v362, 5
        %s446 = vtos %v444
        %v447 = vstv %s446
        %v448 = vmul.f32 %v443, %v365
        %v449 = vmul.f32 %v447, %v365
        %v450 = vmul.f32 %v448, %v448
        %v451 = vsub.f32 %v449, %v450
        %v452 = vadd.f32 %v451, 1e-05
        %v453 = vrsqrt.pop %v452
        %v454 = vadd.f32 %v448, 0.0
        %v455 = vadd.f32 %v453, 0.0
        %v456 = vrot.slane %v359, 6
        %s458 = vtos %v456
        %v459 = vstv %s458
        %v460 = vrot.slane %v362, 6
        %s462 = vtos %v460
        %v463 = vstv %s462
        %v464 = vmul.f32 %v459, %v365
        %v465 = vmul.f32 %v463, %v365
        %v466 = vmul.f32 %v464, %v464
        %v467 = vsub.f32 %v465, %v466
        %v468 = vadd.f32 %v467, 1e-05
        %v469 = vrsqrt.pop %v468
        %v470 = vadd.f32 %v464, 0.0
        %v471 = vadd.f32 %v469, 0.0
        %v472 = vrot.slane %v359, 7
        %s474 = vtos %v472
        %v475 = vstv %s474
        %v476 = vrot.slane %v362, 7
        %s478 = vtos %v476
        %v479 = vstv %s478
        %v480 = vmul.f32 %v475, %v365
        %v481 = vmul.f32 %v479, %v365
        %v482 = vmul.f32 %v480, %v480
        %v483 = vsub.f32 %v481, %v482
        %v484 = vadd.f32 %v483, 1e-05
        %v485 = vrsqrt.pop %v484
        %v486 = vadd.f32 %v480, 0.0
        %v487 = vadd.f32 %v485, 0.0
        %vm488 = vcmask 1040384
        %v489 = vsel %vm488, %v372, %v390
        %vm490 = vcmask 1041408
        %v491 = vsel %vm490, %v489, %v406
        %vm492 = vcmask 1042432
        %v493 = vsel %vm492, %v491, %v422
        %vm494 = vcmask 1043456
        %v495 = vsel %vm494, %v493, %v438
        %vm496 = vcmask 1044480
        %v497 = vsel %vm496, %v495, %v454
        %vm498 = vcmask 1045504
        %v499 = vsel %vm498, %v497, %v470
        %vm500 = vcmask 1046528
        %v501 = vsel %vm500, %v499, %v486
        %v502 = vsel %vm488, %v373, %v391
        %v503 = vsel %vm490, %v502, %v407
        %v504 = vsel %vm492, %v503, %v423
        %v505 = vsel %vm494, %v504, %v439
        %v506 = vsel %vm496, %v505, %v455
        %v507 = vsel %vm498, %v506, %v471
        %v508 = vsel %vm500, %v507, %v487
        %v509 = vld [vmem:[%s3] sm:$0xff]
        %v510 = vmul.f32 %v508, %v509
        %v511 = vld [vmem:[%s4] sm:$0xff]
        %v512 = vmul.f32 %v501, %v510
        %v513 = vsub.f32 %v511, %v512
        %515 = vset.pattern.permute.xlu0 0
        %516 = vperm.xlu0 %515, %v510
        %v517 = vpop.permute.xlu0 %516
        %v519 = vmul.f32 %v351, %v517
        %521 = vset.pattern.permute.xlu0 0
        %522 = vperm.xlu0 %521, %v513
        %v523 = vpop.permute.xlu0 %522
        %v525 = vadd.f32 %v519, %v523
        %s526 = sld [smem:[#allocation2]]
        %vm527 = vcmp.ge.f32.partialorder %v525, 0.0
        %v528 = vstv %s526
        %v529 = vmul.f32 %v528, %v525
        %v530 = vsel %vm527, %v525, %v529
        %v531 = vadd.f32 %v248, %v530
        %v532 = vmul.f32 %v531, 0.5
        %533 = vst [vmem:[%s243] sm:$0xff] %v532
        %s534 = sand.u32 %s160, 1
        %s535 = scalar_lea.sflag [#allocation4], %s534
        %s536 = sand.u32 %s160, 1
        %s537 = smul.addr %s536, 8
        %s538 = scalar_lea.vmem [#allocation3], %s537
        // Predicated region
        $region45: #{tpu_custom_call.1} parent=43 // pred_check
          %p539 = pneg %p170
        $region46: #{tpu_custom_call.1} parent=43 // pred_check_branch
          %541 = sbr.rel (%p539) target = $region48
        $region47: #{tpu_custom_call.1} parent=43 // pred_region
          %s543 = ssub.s32 128, 128
          %544 = vsyncadd %s535, %s543
          %s545 = smul.addr %s21, 128
          %s546 = scalar_lea.hbm %s6, %s545
          %s548 = sshll.u32 %s538, 4
          %s549 = int_to_ptr.vmem [resolvable:$true] %s548
          %551 = dma.vmem_to_hbm [thread:$0]  %s549, 128, %s546, %s535
        $region48: #{tpu_custom_call.1} parent=43 // pred_fallthru
          _
      $region44: #{tpu_custom_call.1} parent=5 // pred_fallthru
        _
      %p552 = scmp.le.s32.totalorder 2, %s16
      // Predicated region
      $region49: #{tpu_custom_call.1} parent=5 // pred_check
        %p553 = pneg %p552
      $region50: #{tpu_custom_call.1} parent=5 // pred_check_branch
        %555 = sbr.rel (%p553) target = $region52
      $region51: #{tpu_custom_call.1} parent=5 // pred_region
        %s556 = ssub.s32 %s16, 2
        // Predicated region
        $region53: #{tpu_custom_call.1} parent=51 // pred_check
          %p557 = pneg %p176
        $region54: #{tpu_custom_call.1} parent=51 // pred_check_branch
          %559 = sbr.rel (%p557) target = $region56
        $region55: #{tpu_custom_call.1} parent=51 // pred_region
          %s560 = sand.u32 %s161, 1
          %s561 = scalar_lea.sflag [#allocation4], %s560
          %s562 = sand.u32 %s161, 1
          %s563 = smul.addr %s562, 8
          %s564 = scalar_lea.vmem [#allocation3], %s563
          %565 = dma.done %s561, 128
        $region56: #{tpu_custom_call.1} parent=51 // pred_fallthru
          _
      $region52: #{tpu_custom_call.1} parent=5 // pred_fallthru
        _
    $region6: #{tpu_custom_call.1} parent=1 // loop_footer
      %s20 = sadd.s32 1, %s16
    $region7: #{tpu_custom_call.1} parent=1 // loop_footer_branch
      %15 = sbr.rel target = $region3
    $region8: #{tpu_custom_call.1} parent=1 // loop_exit
      _
    %566 = vsyncpa [#allocation4], 1
    %s567 = scalar_lea.sflag [#allocation4], 1
    %568 = vsyncpa %s567, 1

</llo_original>
